<compile_context>
chip_gen: v7x
topology: tpu7x:2x2x1
jax: 0.10.0
libtpu: 0.0.40
codegen_flags: <defaults>
</compile_context>

<pallas_src>
import functools
import math

import jax
import jax.numpy as jnp
from jax.experimental import pallas as pl
from jax.experimental.pallas import tpu as pltpu


# ----------------------------------------------------------------------------
# Parameter / buffer construction (matches the PyTorch module buffer)
# ----------------------------------------------------------------------------
def make_positional_encoding(max_len: int, d_model: int,
                             dtype=jnp.float32) -> jnp.ndarray:
    """pe[pos, 2i]   = sin(pos * exp(2i * -ln(10000)/d_model))
       pe[pos, 2i+1] = cos(pos * exp(2i * -ln(10000)/d_model))"""
    position = jnp.arange(0, max_len, dtype=jnp.float32)[:, None]          # (L, 1)
    div_term = jnp.exp(
        jnp.arange(0, d_model, 2, dtype=jnp.float32)
        * -(math.log(10000.0) / d_model)
    )                                                                       # (D/2,)
    ang = position * div_term                                               # (L, D/2)
    pe = jnp.zeros((max_len, d_model), dtype=jnp.float32)
    pe = pe.at[:, 0::2].set(jnp.sin(ang))
    pe = pe.at[:, 1::2].set(jnp.cos(ang))
    return pe.astype(dtype)                                                 # (L, D)


# ----------------------------------------------------------------------------
# Pallas kernels (elementwise, purely HBM-bandwidth bound)
# ----------------------------------------------------------------------------
def _pe_add_kernel(x_ref, pe_ref, o_ref):
    # x_ref / o_ref: (TS, D) or (B, TF); pe_ref: (TS, D) or (1, TF).
    val = x_ref[...].astype(jnp.float32) + pe_ref[...].astype(jnp.float32)
    o_ref[...] = val.astype(o_ref.dtype)


def _pe_add_dropout_kernel(x_ref, pe_ref, bits_ref, o_ref, *,
                           keep_threshold, inv_keep):
    val = x_ref[...].astype(jnp.float32) + pe_ref[...].astype(jnp.float32)
    # Inverted dropout: keep iff bits >= p * 2^32  (direct uint32 compare —
    # no shift / int->float convert / multiply on the VPU).
    keep = bits_ref[...] >= jnp.uint32(keep_threshold)
    o_ref[...] = jnp.where(keep, val * jnp.float32(inv_keep),
                           jnp.float32(0.0)).astype(o_ref.dtype)


# ----------------------------------------------------------------------------
# Tile-size heuristics (target ~2 MiB per block; raise on v5e/v6e)
# ----------------------------------------------------------------------------
def _seq_tile(s, d, itemsize, target_bytes):
    if s % 8 != 0:
        return s                                 # full axis (tiny/ragged seq)
    rows = max(8, target_bytes // max(1, d * itemsize))
    ts = min(s, (rows // 8) * 8)
    while s % ts:
        ts -= 8
    return ts


def _flat_tile(n, b, itemsize, target_bytes):
    if n % 128 != 0:
        return n                                 # full axis fallback
    elems = max(128, target_bytes // max(1, b * itemsize))
    tf = min(n, (elems // 128) * 128)
    while n % tf:
        tf -= 128
    return tf


# ----------------------------------------------------------------------------
# Wrapper
# ----------------------------------------------------------------------------
def positional_encoding_forward(x, pe_table, *, p=0.1, training=False,
                                dropout_bits=None,
                                target_block_bytes=2 * 1024 * 1024,
                                vmem_limit_bytes=48 * 1024 * 1024):
    """x: (B, S, D).  Returns dropout(x + pe[:S]).

    In training mode, `dropout_bits` must be a uint32 array of x's shape
    (e.g. jax.random.bits(key, x.shape, dtype=jnp.uint32))."""
    B, S, D = x.shape
    itemsize = jnp.dtype(x.dtype).itemsize
    # Store the PE slice in the activation dtype (bf16 table for bf16 acts);
    # the kernel upcasts to f32 for the arithmetic.
    pe_slice = pe_table[:S, :].astype(x.dtype)

    use_dropout = bool(training) and p > 0.0
    if use_dropout:
        if dropout_bits is None:
            raise ValueError(
                "training=True with p>0 requires dropout_bits (uint32, shape of x)")
        keep_threshold = min(int(p * 4294967296.0), 4294967295)
        kernel = functools.partial(_pe_add_dropout_kernel,
                                   keep_threshold=keep_threshold,
                                   inv_keep=1.0 / (1.0 - p))
    else:
        kernel = _pe_add_kernel

    if D % 128 == 0:
        # ---- Dense-D path: 3-D blocks, sequence axis tiled, batch squeezed.
        ts = _seq_tile(S, D, itemsize, target_block_bytes)
        grid = (B, S // ts)
        x_spec = pl.BlockSpec((None, ts, D), lambda b, s: (b, s, 0))
        in_specs = [x_spec, pl.BlockSpec((ts, D), lambda b, s: (s, 0))]
        args = [x, pe_slice]
        if use_dropout:
            in_specs.append(pl.BlockSpec((None, ts, D), lambda b, s: (b, s, 0)))
            args.append(dropout_bits)
        return pl.pallas_call(
            kernel,
            out_shape=jax.ShapeDtypeStruct((B, S, D), x.dtype),
            grid=grid,
            in_specs=in_specs,
            out_specs=pl.BlockSpec((None, ts, D), lambda b, s: (b, s, 0)),
            input_output_aliases={0: 0},
            compiler_params=pltpu.CompilerParams(
                dimension_semantics=("parallel", "parallel"),
                vmem_limit_bytes=vmem_limit_bytes),
        )(*args)

    # ---- Lane-dense fallback (D not a multiple of 128, e.g. demo D=32):
    # view the problem as (B, S*D) + (1, S*D) so the block's last axis is a
    # large multiple of 128 -> unmasked stores.
    n = S * D
    tf = _flat_tile(n, B, itemsize, target_block_bytes)
    grid = (n // tf,)
    x2 = x.reshape(B, n)
    pe2 = pe_slice.reshape(1, n)
    in_specs = [pl.BlockSpec((B, tf), lambda t: (0, t)),
                pl.BlockSpec((1, tf), lambda t: (0, t))]
    args = [x2, pe2]
    if use_dropout:
        in_specs.append(pl.BlockSpec((B, tf), lambda t: (0, t)))
        args.append(dropout_bits.reshape(B, n))
    out = pl.pallas_call(
        kernel,
        out_shape=jax.ShapeDtypeStruct((B, n), x.dtype),
        grid=grid,
        in_specs=in_specs,
        out_specs=pl.BlockSpec((B, tf), lambda t: (0, t)),
        input_output_aliases={0: 0},
        compiler_params=pltpu.CompilerParams(
            dimension_semantics=("parallel",),
            vmem_limit_bytes=vmem_limit_bytes),
    )(*args)
    return out.reshape(B, S, D)


# ----------------------------------------------------------------------------
# Demo / smoke test
# ----------------------------------------------------------------------------
if __name__ == "__main__":
    key = jax.random.PRNGKey(0)
    k_x1, k_x2, k_bits = jax.random.split(key, 3)

    dropout_p = 0.1
    max_len = 64            # small synthetic max_len (module default is 5000)

    # --- Path 1: D not a multiple of 128 -> flattened lane-dense (B, S*D) view.
    B, S, D = 2, 8, 32
    x = jax.random.normal(k_x1, (B, S, D), dtype=jnp.float32)
    pe = make_positional_encoding(max_len, D)

    out = positional_encoding_forward(x, pe, p=dropout_p, training=False)
    out = jax.block_until_ready(out)
    ref = x + pe[None, :S, :]
    assert jnp.allclose(out, ref, atol=1e-6), "eval-mode mismatch (flattened path)"

    # Training mode: deterministic uint32 bits generated outside the kernel
    # (works on real TPU and under interpret; tiling-invariant randomness).
    bits = jax.random.bits(k_bits, (B, S, D), dtype=jnp.uint32)
    out_tr = positional_encoding_forward(x, pe, p=dropout_p, training=True,
                                         dropout_bits=bits)
    out_tr = jax.block_until_ready(out_tr)
    thr = jnp.uint32(min(int(dropout_p * 4294967296.0), 4294967295))
    ref_tr = jnp.where(bits >= thr,
                       ref * jnp.float32(1.0 / (1.0 - dropout_p)),
                       jnp.float32(0.0))
    assert jnp.allclose(out_tr, ref_tr, atol=1e-5), "train-mode mismatch"

    # --- Path 2: D multiple of 128 -> 3-D (None, TS, D) blocks, grid (B, S//TS).
    B2, S2, D2 = 2, 16, 128
    x2 = jax.random.normal(k_x2, (B2, S2, D2), dtype=jnp.float32)
    pe2 = make_positional_encoding(max_len, D2)
    out2 = positional_encoding_forward(x2, pe2, p=dropout_p, training=False)
    out2 = jax.block_until_ready(out2)
    ref2 = x2 + pe2[None, :S2, :]
    assert jnp.allclose(out2, ref2, atol=1e-6), "eval-mode mismatch (3-D path)"

    print("KERNEL_OK")
</pallas_src>

<mosaic_0001>
module attributes {stable_mosaic.version = 11 : i64} {
  func.func @_pe_add_kernel(%arg0: i32, %arg1: memref<2x256xf32, #tpu.memory_space<vmem>>, %arg2: memref<1x256xf32, #tpu.memory_space<vmem>>, %arg3: memref<2x256xf32, #tpu.memory_space<vmem>>) attributes {dimension_semantics = [#tpu.dimension_semantics<parallel>], iteration_bounds = array<i64: 1>, scalar_prefetch = 0 : i64, scratch_operands = 0 : i64, tpu.core_type = #tpu.core_type<tc>, window_params = [{transform_indices = @transform_0, window_bounds = array<i64: 2, 256>}, {transform_indices = @transform_1, window_bounds = array<i64: 1, 256>}, {transform_indices = @transform_2, window_bounds = array<i64: 2, 256>}]} {
    %c0 = arith.constant 0 : index
    %c0_0 = arith.constant 0 : index
    %0 = vector.load %arg1[%c0, %c0_0] : memref<2x256xf32, #tpu.memory_space<vmem>>, vector<2x256xf32>
    %c0_1 = arith.constant 0 : index
    %c0_2 = arith.constant 0 : index
    %1 = vector.load %arg2[%c0_1, %c0_2] : memref<1x256xf32, #tpu.memory_space<vmem>>, vector<1x256xf32>
    %2 = vector.broadcast %1 : vector<1x256xf32> to vector<2x256xf32>
    %3 = arith.addf %0, %2 : vector<2x256xf32>
    %c0_3 = arith.constant 0 : index
    %c0_4 = arith.constant 0 : index
    %4 = vector.load %arg3[%c0_3, %c0_4] : memref<2x256xf32, #tpu.memory_space<vmem>>, vector<2x256xf32>
    tpu.vector_store %arg3[%c0_3, %c0_4], %3 {strides = array<i32>} : memref<2x256xf32, #tpu.memory_space<vmem>>, vector<2x256xf32>,
    return
  }
  func.func @transform_0(%arg0: i32) -> (i32, i32) {
    %c0_i32 = arith.constant 0 : i32
    %c0_i32_0 = arith.constant 0 : i32
    return %c0_i32, %arg0 : i32, i32
  }
  func.func @transform_1(%arg0: i32) -> (i32, i32) {
    %c0_i32 = arith.constant 0 : i32
    %c0_i32_0 = arith.constant 0 : i32
    return %c0_i32, %arg0 : i32, i32
  }
  func.func @transform_2(%arg0: i32) -> (i32, i32) {
    %c0_i32 = arith.constant 0 : i32
    %c0_i32_0 = arith.constant 0 : i32
    return %c0_i32, %arg0 : i32, i32
  }
}

</mosaic_0001>

<llo_original>
// kernel: tpu_custom_call.1
$region0: #{tpu_custom_call.1}
  #allocation0 [shape = 'u32[]', space=smem, size = 0x4, offset = 0x4, fixed_abs, tag = 'smem constant byte address 0x4 - core index']
  #allocation1 [shape = 'u32[144,128]{1,0:T(1,128)}', space=vmem, size = 0x12000, scoped, tag = 'internal scratch']
  %s0 = inlined_call_operand.hbm [shape: f32[2,256], index: 0, kind: input, shape index: {}, may-alias: {0,2}]
  %s1 = inlined_call_operand.vmem [shape: f32[1,256], index: 1, kind: input, shape index: {}]
  %s2 = inlined_call_operand.hbm [shape: f32[2,256], index: 2, kind: output, shape index: {}, may-alias: {0,2}]
  %s3 = sld [smem:[#allocation0]]
  $region22: #{tpu_custom_call.1} parent=0
    _
  %s5 = ssub.s32 1, %s3
  %s6 = scalar_select 0, %s5, %s3
  $region1: #{tpu_custom_call.1} parent=0
    #allocation2 [shape = 'u8[2048]{0}', space=vmem, size = 0x800, scoped, tag = 'input window, operand 0, single buffered']
    #allocation3 [shape = 's32[1]{0}', space=sflag, size = 0x4, scoped, tag = 'scoped memory for tpu_custom_call.1']
    #allocation4 [shape = 's32[1]{0}', space=sflag, size = 0x4, scoped, tag = 'scoped memory for tpu_custom_call.1']
    #allocation5 [shape = 'u8[2048]{0}', space=vmem, size = 0x800, scoped, tag = 'output window, operand 0, single buffered']
    %7 = vsyncpa [#allocation3], 0
    %8 = vsyncpa [#allocation4], 0
    // Predicated region
    $region2: #{tpu_custom_call.1} parent=1 // pred_check
      _
    $region3: #{tpu_custom_call.1} parent=1 // pred_check_branch
      %10 = sbr.rel (0) target = $region5
    $region4: #{tpu_custom_call.1} parent=1 // pred_region
      %s12 = ssub.s32 64, 64
      %13 = vsyncadd [#allocation3], %s12
      %s15 = sshll.u32 [#allocation2], 4
      %s16 = int_to_ptr.vmem [resolvable:$true] %s15
      %18 = dma.hbm_to_vmem [thread:$0]  %s0, 64, %s16, [#allocation3]
    $region5: #{tpu_custom_call.1} parent=1 // pred_fallthru
      _
    // Predicated region
    $region6: #{tpu_custom_call.1} parent=1 // pred_check
      _
    $region7: #{tpu_custom_call.1} parent=1 // pred_check_branch
      %20 = sbr.rel (0) target = $region9
    $region8: #{tpu_custom_call.1} parent=1 // pred_region
      _
    $region9: #{tpu_custom_call.1} parent=1 // pred_fallthru
      _
    // Predicated region
    $region10: #{tpu_custom_call.1} parent=1 // pred_check
      _
    $region11: #{tpu_custom_call.1} parent=1 // pred_check_branch
      %22 = sbr.rel (0) target = $region13
    $region12: #{tpu_custom_call.1} parent=1 // pred_region
      %23 = dma.done [#allocation3], 64
    $region13: #{tpu_custom_call.1} parent=1 // pred_fallthru
      _
    %v24 = vld [vmem:[#allocation2] sm:$0xf]
    %v25 = vld [vmem:[%s1] sm:$0x3]
    %v27 = vlaneseq
    %v28 = vshrl.u32 %v27, 7
    %v29 = vsub.s32 0, %v28
    %v30 = vrot.slane %v25, %v29
    %v31 = vlaneseq
    %v32 = vshrl.u32 %v31, 7
    %v33 = vsub.s32 1, %v32
    %v34 = vrot.slane %v25, %v33
    %v35 = vcombine.low %v30, %v34
    %v37 = vunpack.c.l.s4 1983009808
    %v38 = vunpack.c.0.s8 %v37
    %v39 = vlaneseq
    %v40 = vshrl.u32 %v39, 7
    %v41 = vsub.s32 %v38, %v40
    %v42 = vrot.slane %v35, %v41
    %v44 = vadd.f32 %v24, %v42
    %45 = vst [vmem:[#allocation5] sm:$0xf] %v44
    // Predicated region
    $region14: #{tpu_custom_call.1} parent=1 // pred_check
      _
    $region15: #{tpu_custom_call.1} parent=1 // pred_check_branch
      %47 = sbr.rel (0) target = $region17
    $region16: #{tpu_custom_call.1} parent=1 // pred_region
      %s49 = ssub.s32 64, 64
      %50 = vsyncadd [#allocation4], %s49
      %s52 = sshll.u32 [#allocation5], 4
      %s53 = int_to_ptr.vmem [resolvable:$true] %s52
      %55 = dma.vmem_to_hbm [thread:$0]  %s53, 64, %s2, [#allocation4]
    $region17: #{tpu_custom_call.1} parent=1 // pred_fallthru
      _
    // Predicated region
    $region18: #{tpu_custom_call.1} parent=1 // pred_check
      _
    $region19: #{tpu_custom_call.1} parent=1 // pred_check_branch
      %57 = sbr.rel (0) target = $region21
    $region20: #{tpu_custom_call.1} parent=1 // pred_region
      %58 = dma.done [#allocation4], 64
    $region21: #{tpu_custom_call.1} parent=1 // pred_fallthru
      _
    %59 = vsyncpa [#allocation3], 1
    %60 = vsyncpa [#allocation4], 1

</llo_original>
